<compile_context>
chip_gen: v6e
topology: v6e:2x2x1
jax: 0.10.0
libtpu: 0.0.40
codegen_flags: <defaults>
</compile_context>

<pallas_src>
import functools

import jax
import jax.numpy as jnp
import numpy as np
from jax import lax
from jax.experimental import pallas as pl
from jax.experimental.pallas import tpu as pltpu

_F32_POS_INF_BITS = 0x7F800000  # all finite non-negative f32 bit patterns are below this


# ----------------------------------------------------------------------------
# Pallas kernel: per-batch multibox loss, one (1,1,1) output block per batch.
# ----------------------------------------------------------------------------
def _multibox_loss_kernel(loc_p_ref, conf_ref, loc_t_ref, cls_t_ref, out_ref, *,
                          negative_ratio, alpha, num_boxes):
    loc_pred = loc_p_ref[0].astype(jnp.float32)    # (4, NB)
    conf = conf_ref[0].astype(jnp.float32)         # (C, NB)  (may arrive bf16)
    tgt_loc = loc_t_ref[0].astype(jnp.float32)     # (4, NB)
    tgt_cls = cls_t_ref[0].astype(jnp.float32)     # (1, NB)  (0 = background)

    pos = (tgt_cls > 0.0).astype(jnp.float32)      # (1, NB)
    n_pos = jnp.sum(pos)
    # batches with zero positives contribute nothing (remained_batch_indices)
    inv_n = jnp.where(n_pos > 0.0, 1.0 / jnp.maximum(n_pos, 1.0), 0.0)

    # ---- smooth-L1 localization loss over positive anchors, / N per batch ----
    diff = loc_pred - tgt_loc
    absd = jnp.abs(diff)
    sl1 = jnp.where(absd < 1.0, 0.5 * diff * diff, absd - 0.5)          # (4, NB)
    loc_loss = jnp.sum(jnp.sum(sl1, axis=0, keepdims=True) * pos) * inv_n

    # ---- softmax cross entropy per anchor (class axis on sublanes) ----
    cmax = jnp.max(conf, axis=0, keepdims=True)                         # (1, NB)
    lse = jnp.log(jnp.sum(jnp.exp(conf - cmax), axis=0, keepdims=True)) + cmax
    class_ids = lax.broadcasted_iota(jnp.int32, conf.shape, 0)          # (C, NB)
    onehot = (class_ids == tgt_cls.astype(jnp.int32)).astype(jnp.float32)
    picked = jnp.sum(conf * onehot, axis=0, keepdims=True)              # (1, NB)
    ce = lse - picked                                                   # (1, NB), >= 0

    pos_loss = jnp.sum(ce * pos) * inv_n

    # ---- hard negative mining: top (ratio * n_pos) negative CE losses -------
    # Counting bisection for the cutoff.  `masked` is non-negative (CE >= 0),
    # so its int32 bit pattern is order-isomorphic to its value.  31 halvings
    # of the (-1, +inf_bits] interval pin the smallest bit value `cutoff`
    # with count(masked_bits > cutoff) < num_neg; selecting
    # masked_bits >= cutoff reproduces the strictly-greater-rank criterion.
    masked = ce * (1.0 - pos)                                           # (1, NB), >= 0
    masked_bits = pltpu.bitcast(masked, jnp.int32)                      # (1, NB) int32
    num_neg = jnp.minimum(negative_ratio * n_pos, float(num_boxes - 1))

    def bisect(_, carry):
        lo, hi = carry
        mid = lo + ((hi - lo) >> 1)
        cnt = jnp.sum((masked_bits > mid).astype(jnp.float32))
        go_up = cnt >= num_neg
        return jnp.where(go_up, mid, lo), jnp.where(go_up, hi, mid)

    _, cutoff = lax.fori_loop(
        0, 31, bisect, (jnp.int32(-1), jnp.int32(_F32_POS_INF_BITS)))

    # TODO(synk): ties at the cutoff (incl. positives / easy negatives at
    # masked == 0 when num_neg exceeds the number of non-zero negative losses)
    # are all selected, whereas torch's sort-index tie-break picks exactly
    # num_neg of them.  Matches the pure-JAX reference below.
    selected = (masked_bits >= cutoff).astype(jnp.float32)              # (1, NB)
    # CE against background class 0 (standard SSD head convention).
    neg_ce = lse - conf[0:1, :]
    neg_loss = jnp.sum(neg_ce * selected) * inv_n

    out_ref[...] = jnp.reshape(alpha * loc_loss + pos_loss + neg_loss, (1, 1, 1))


def multibox_loss(loc_pred, conf_pred, loc_target, cls_target,
                  negative_ratio=3.0, alpha=1.0):
    """SSD multibox loss.

    loc_pred:   (B, 4, NB) float32 channel-major localization predictions.
    conf_pred:  (B, C, NB) float32/bfloat16 channel-major class logits.
    loc_target: (B, 4, NB) float32 matched/encoded box targets.
    cls_target: (B, 1, NB) float32 matched classes (0 = background).
    Returns a scalar loss.
    """
    B, _, nb = loc_pred.shape
    C = conf_pred.shape[1]

    out = pl.pallas_call(
        functools.partial(
            _multibox_loss_kernel,
            negative_ratio=float(negative_ratio),
            alpha=float(alpha),
            num_boxes=int(nb),
        ),
        out_shape=jax.ShapeDtypeStruct((B, 1, 1), jnp.float32),
        grid=(B,),
        in_specs=[
            pl.BlockSpec((1, 4, nb), lambda b: (b, 0, 0)),
            pl.BlockSpec((1, C, nb), lambda b: (b, 0, 0)),
            pl.BlockSpec((1, 4, nb), lambda b: (b, 0, 0)),
            pl.BlockSpec((1, 1, nb), lambda b: (b, 0, 0)),
        ],
        out_specs=pl.BlockSpec((1, 1, 1), lambda b: (b, 0, 0)),
        compiler_params=pltpu.CompilerParams(
            dimension_semantics=("parallel",),
            vmem_limit_bytes=32 * 1024 * 1024,
        ),
    )(loc_pred, conf_pred, loc_target, cls_target)
    return jnp.sum(out)


# ----------------------------------------------------------------------------
# Plain-JAX glue: anchor matching / encoding (MultiBoxLoss.match + encode).
# ----------------------------------------------------------------------------
def cxcywh_to_xyxy(b):
    cx, cy, w, h = b[..., 0], b[..., 1], b[..., 2], b[..., 3]
    return jnp.stack([cx - w / 2, cy - h / 2, cx + w / 2, cy + h / 2], -1)


def box_iou(a, b):  # a: (G, 4) xyxy, b: (NB, 4) xyxy
    lt = jnp.maximum(a[:, None, :2], b[None, :, :2])
    rb = jnp.minimum(a[:, None, 2:], b[None, :, 2:])
    wh = jnp.clip(rb - lt, 0.0)
    inter = wh[..., 0] * wh[..., 1]
    area_a = (a[:, 2] - a[:, 0]) * (a[:, 3] - a[:, 1])
    area_b = (b[:, 2] - b[:, 0]) * (b[:, 3] - b[:, 1])
    return inter / (area_a[:, None] + area_b[None, :] - inter)


def encode(gt_boxes, anchors):
    g_cxcy = (gt_boxes[:, :2] - anchors[:, :2]) / anchors[:, 2:]
    g_wh = jnp.log(gt_boxes[:, 2:]) - jnp.log(anchors[:, 2:])
    return jnp.concatenate([g_cxcy, g_wh], -1)


def match_single(gt_boxes, gt_cls, anchors, iou_threshold=0.5):
    # gt_boxes (G,4) cxcywh, gt_cls (G,) float -> (NB, 5) matched target
    iou = box_iou(cxcywh_to_xyxy(gt_boxes), cxcywh_to_xyxy(anchors))  # (G, NB)
    best_overlap = iou.max(0)
    best_gt_idx = iou.argmax(0)
    over = best_overlap > iou_threshold
    enc_all = encode(gt_boxes[best_gt_idx], anchors)
    cls_all = gt_cls[best_gt_idx] + 1.0
    loc_t = jnp.where(over[:, None], enc_all, 0.0)
    cls_t = jnp.where(over, cls_all, 0.0)
    best_prior_idx = iou.argmax(1)                                    # (G,)
    enc_gt = encode(gt_boxes, anchors[best_prior_idx])
    loc_t = loc_t.at[best_prior_idx].set(enc_gt)
    cls_t = cls_t.at[best_prior_idx].set(gt_cls + 1.0)
    return jnp.concatenate([loc_t, cls_t[:, None]], -1)


# ----------------------------------------------------------------------------
# Pure-JAX reference of the loss math (module layout), for correctness check.
# ----------------------------------------------------------------------------
def reference_loss(pred, target, negative_ratio, alpha):
    _, nb, _ = pred.shape
    loc_pred, conf = pred[..., :4], pred[..., 4:]
    tgt_loc, tgt_cls = target[..., :4], target[..., 4]
    pos = (tgt_cls > 0).astype(jnp.float32)
    n_pos = pos.sum(-1)
    inv_n = jnp.where(n_pos > 0, 1.0 / jnp.maximum(n_pos, 1.0), 0.0)

    diff = loc_pred - tgt_loc
    absd = jnp.abs(diff)
    sl1 = jnp.where(absd < 1.0, 0.5 * diff * diff, absd - 0.5).sum(-1)
    loc_loss = ((sl1 * pos).sum(-1) * inv_n).sum()

    cmax = conf.max(-1, keepdims=True)
    lse = jnp.log(jnp.exp(conf - cmax).sum(-1)) + cmax[..., 0]
    picked = jnp.take_along_axis(conf, tgt_cls.astype(jnp.int32)[..., None], -1)[..., 0]
    ce = lse - picked
    pos_loss = ((ce * pos).sum(-1) * inv_n).sum()

    masked = ce * (1.0 - pos)
    num_neg = jnp.minimum(negative_ratio * n_pos, float(nb - 1))
    # descending rank: number of strictly-greater negative losses
    bigger = masked[:, :, None] > masked[:, None, :]   # [b, a, i] = m[b,a] > m[b,i]
    rank = bigger.sum(axis=1).astype(jnp.float32)      # (B, NB)
    sel = (rank < num_neg[:, None]).astype(jnp.float32)
    neg_ce = lse - conf[..., 0]
    neg_loss = ((neg_ce * sel).sum(-1) * inv_n).sum()
    return alpha * loc_loss + pos_loss + neg_loss


if __name__ == "__main__":
    key = jax.random.PRNGKey(0)
    B, NB, C, G = 2, 200, 8, 3        # small stand-ins for (batch, 8732, 1+c)

    # deterministic anchors (cxcywh) on a 20x10 grid
    idx = jnp.arange(NB)
    cx = ((idx % 20).astype(jnp.float32) + 0.5) / 20.0
    cy = ((idx // 20).astype(jnp.float32) + 0.5) / 10.0
    wh = jnp.full((NB,), 0.15, jnp.float32)
    anchors = jnp.stack([cx, cy, wh, wh], -1)

    k1, k2, k3, k4, k5 = jax.random.split(key, 5)
    gt_cxcy = jax.random.uniform(k1, (B, G, 2), minval=0.2, maxval=0.8)
    gt_wh = jax.random.uniform(k2, (B, G, 2), minval=0.1, maxval=0.35)
    gt_boxes = jnp.concatenate([gt_cxcy, gt_wh], -1)
    gt_cls = jax.random.randint(k3, (B, G), 0, C - 1).astype(jnp.float32)

    # head outputs, channel-major: loc (B,4,NB) f32, conf (B,C,NB) bf16
    loc_pred = 0.5 * jax.random.normal(k4, (B, 4, NB), dtype=jnp.float32)
    conf_pred = (0.5 * jax.random.normal(k5, (B, C, NB), dtype=jnp.float32)
                 ).astype(jnp.bfloat16)

    # matching / encoding (plain JAX glue) -> (B, NB, 5), then channel-major splits
    target = jax.vmap(lambda gb, gc: match_single(gb, gc, anchors, 0.5))(gt_boxes, gt_cls)
    loc_target = jnp.transpose(target[..., :4], (0, 2, 1))   # (B, 4, NB)
    cls_target = jnp.transpose(target[..., 4:5], (0, 2, 1))  # (B, 1, NB)

    loss = multibox_loss(loc_pred, conf_pred, loc_target, cls_target,
                         negative_ratio=3.0, alpha=1.0)
    jax.block_until_ready(loss)

    # reference on the module's (B, NB, 4+C) layout, same bf16-quantized conf
    pred_rm = jnp.concatenate(
        [jnp.transpose(loc_pred, (0, 2, 1)),
         jnp.transpose(conf_pred.astype(jnp.float32), (0, 2, 1))], -1)
    ref = reference_loss(pred_rm, target, 3.0, 1.0)
    np.testing.assert_allclose(np.asarray(loss), np.asarray(ref), rtol=1e-4, atol=1e-4)
    print("KERNEL_OK")
</pallas_src>

<mosaic_0001>
module attributes {stable_mosaic.version = 11 : i64} {
  func.func @_multibox_loss_kernel(%arg0: i32, %arg1: memref<1x4x200xf32, #tpu.memory_space<vmem>>, %arg2: memref<1x8x200xbf16, #tpu.memory_space<vmem>>, %arg3: memref<1x4x200xf32, #tpu.memory_space<vmem>>, %arg4: memref<1x1x200xf32, #tpu.memory_space<vmem>>, %arg5: memref<1x1x1xf32, #tpu.memory_space<vmem>>) attributes {dimension_semantics = [#tpu.dimension_semantics<parallel>], iteration_bounds = array<i64: 2>, scalar_prefetch = 0 : i64, scratch_operands = 0 : i64, tpu.core_type = #tpu.core_type<tc>, window_params = [{transform_indices = @transform_0, window_bounds = array<i64: 1, 4, 200>}, {transform_indices = @transform_1, window_bounds = array<i64: 1, 8, 200>}, {transform_indices = @transform_2, window_bounds = array<i64: 1, 4, 200>}, {transform_indices = @transform_3, window_bounds = array<i64: 1, 1, 200>}, {transform_indices = @transform_4, window_bounds = array<i64: 1, 1, 1>}]} {
    %c0 = arith.constant 0 : index
    %c0_0 = arith.constant 0 : index
    %c0_1 = arith.constant 0 : index
    %0 = vector.load %arg1[%c0, %c0_0, %c0_1] : memref<1x4x200xf32, #tpu.memory_space<vmem>>, vector<1x4x200xf32>
    %1 = vector.shape_cast %0 : vector<1x4x200xf32> to vector<4x200xf32>
    %c0_2 = arith.constant 0 : index
    %c0_3 = arith.constant 0 : index
    %c0_4 = arith.constant 0 : index
    %2 = vector.load %arg2[%c0_2, %c0_3, %c0_4] : memref<1x8x200xbf16, #tpu.memory_space<vmem>>, vector<1x8x200xbf16>
    %3 = vector.shape_cast %2 : vector<1x8x200xbf16> to vector<8x200xbf16>
    %4 = arith.extf %3 : vector<8x200xbf16> to vector<8x200xf32>
    %c0_5 = arith.constant 0 : index
    %c0_6 = arith.constant 0 : index
    %c0_7 = arith.constant 0 : index
    %5 = vector.load %arg3[%c0_5, %c0_6, %c0_7] : memref<1x4x200xf32, #tpu.memory_space<vmem>>, vector<1x4x200xf32>
    %6 = vector.shape_cast %5 : vector<1x4x200xf32> to vector<4x200xf32>
    %c0_8 = arith.constant 0 : index
    %c0_9 = arith.constant 0 : index
    %c0_10 = arith.constant 0 : index
    %7 = vector.load %arg4[%c0_8, %c0_9, %c0_10] : memref<1x1x200xf32, #tpu.memory_space<vmem>>, vector<1x1x200xf32>
    %8 = vector.shape_cast %7 : vector<1x1x200xf32> to vector<1x200xf32>
    %cst = arith.constant 0.000000e+00 : f32
    %9 = vector.broadcast %cst : f32 to vector<1x200xf32>
    %10 = arith.cmpf ogt, %8, %9 : vector<1x200xf32>
    %11 = arith.extui %10 : vector<1x200xi1> to vector<1x200xi32>
    %12 = arith.sitofp %11 : vector<1x200xi32> to vector<1x200xf32>
    %13 = vector.shape_cast %12 : vector<1x200xf32> to vector<1x1x200xf32>
    %cst_11 = arith.constant dense<0.000000e+00> : vector<1xf32>
    %14 = vector.multi_reduction <add>, %13, %cst_11 [1, 2] : vector<1x1x200xf32> to vector<1xf32>
    %15 = vector.shape_cast %14 : vector<1xf32> to vector<1x1x1xf32>
    %16 = vector.extract %15[0, 0, 0] : f32 from vector<1x1x1xf32>
    %cst_12 = arith.constant 0.000000e+00 : f32
    %17 = arith.cmpf ogt, %16, %cst_12 : f32
    %cst_13 = arith.constant 1.000000e+00 : f32
    %18 = arith.maximumf %16, %cst_13 : f32
    %cst_14 = arith.constant 1.000000e+00 : f32
    %19 = arith.divf %cst_14, %18 : f32
    %cst_15 = arith.constant 0.000000e+00 : f32
    %20 = arith.select %17, %19, %cst_15 : f32
    %21 = arith.subf %1, %6 : vector<4x200xf32>
    %22 = math.absf %21 : vector<4x200xf32>
    %cst_16 = arith.constant 1.000000e+00 : f32
    %23 = vector.broadcast %cst_16 : f32 to vector<4x200xf32>
    %24 = arith.cmpf olt, %22, %23 : vector<4x200xf32>
    %cst_17 = arith.constant 5.000000e-01 : f32
    %25 = vector.broadcast %cst_17 : f32 to vector<4x200xf32>
    %26 = arith.mulf %25, %21 : vector<4x200xf32>
    %27 = arith.mulf %26, %21 : vector<4x200xf32>
    %cst_18 = arith.constant 5.000000e-01 : f32
    %28 = vector.broadcast %cst_18 : f32 to vector<4x200xf32>
    %29 = arith.subf %22, %28 : vector<4x200xf32>
    %30 = arith.select %24, %27, %29 : vector<4x200xi1>, vector<4x200xf32>
    %cst_19 = arith.constant dense<0.000000e+00> : vector<200xf32>
    %31 = vector.multi_reduction <add>, %30, %cst_19 [0] : vector<4x200xf32> to vector<200xf32>
    %32 = vector.shape_cast %31 : vector<200xf32> to vector<1x200xf32>
    %33 = arith.mulf %32, %12 : vector<1x200xf32>
    %34 = vector.shape_cast %33 : vector<1x200xf32> to vector<1x1x200xf32>
    %cst_20 = arith.constant dense<0.000000e+00> : vector<1xf32>
    %35 = vector.multi_reduction <add>, %34, %cst_20 [1, 2] : vector<1x1x200xf32> to vector<1xf32>
    %36 = vector.shape_cast %35 : vector<1xf32> to vector<1x1x1xf32>
    %37 = vector.extract %36[0, 0, 0] : f32 from vector<1x1x1xf32>
    %38 = arith.mulf %37, %20 : f32
    %cst_21 = arith.constant dense<0xFF800000> : vector<200xf32>
    %39 = vector.multi_reduction <maximumf>, %4, %cst_21 [0] : vector<8x200xf32> to vector<200xf32>
    %40 = vector.shape_cast %39 : vector<200xf32> to vector<1x200xf32>
    %41 = vector.broadcast %40 : vector<1x200xf32> to vector<8x200xf32>
    %42 = arith.subf %4, %41 : vector<8x200xf32>
    %43 = math.exp %42 : vector<8x200xf32>
    %cst_22 = arith.constant dense<0.000000e+00> : vector<200xf32>
    %44 = vector.multi_reduction <add>, %43, %cst_22 [0] : vector<8x200xf32> to vector<200xf32>
    %45 = vector.shape_cast %44 : vector<200xf32> to vector<1x200xf32>
    %46 = math.log %45 : vector<1x200xf32>
    %47 = arith.addf %46, %40 : vector<1x200xf32>
    %48 = tpu.iota {dimensions = array<i32: 0>} : vector<8x200xi32>
    %49 = arith.fptosi %8 : vector<1x200xf32> to vector<1x200xi32>
    %50 = vector.broadcast %49 : vector<1x200xi32> to vector<8x200xi32>
    %51 = arith.cmpi eq, %48, %50 : vector<8x200xi32>
    %52 = arith.extui %51 : vector<8x200xi1> to vector<8x200xi32>
    %53 = arith.sitofp %52 : vector<8x200xi32> to vector<8x200xf32>
    %54 = arith.mulf %4, %53 : vector<8x200xf32>
    %cst_23 = arith.constant dense<0.000000e+00> : vector<200xf32>
    %55 = vector.multi_reduction <add>, %54, %cst_23 [0] : vector<8x200xf32> to vector<200xf32>
    %56 = vector.shape_cast %55 : vector<200xf32> to vector<1x200xf32>
    %57 = arith.subf %47, %56 : vector<1x200xf32>
    %58 = arith.mulf %57, %12 : vector<1x200xf32>
    %59 = vector.shape_cast %58 : vector<1x200xf32> to vector<1x1x200xf32>
    %cst_24 = arith.constant dense<0.000000e+00> : vector<1xf32>
    %60 = vector.multi_reduction <add>, %59, %cst_24 [1, 2] : vector<1x1x200xf32> to vector<1xf32>
    %61 = vector.shape_cast %60 : vector<1xf32> to vector<1x1x1xf32>
    %62 = vector.extract %61[0, 0, 0] : f32 from vector<1x1x1xf32>
    %63 = arith.mulf %62, %20 : f32
    %cst_25 = arith.constant 1.000000e+00 : f32
    %64 = vector.broadcast %cst_25 : f32 to vector<1x200xf32>
    %65 = arith.subf %64, %12 : vector<1x200xf32>
    %66 = arith.mulf %57, %65 : vector<1x200xf32>
    %67 = tpu.bitcast %66 : vector<1x200xf32> -> vector<1x200xi32>
    %cst_26 = arith.constant 3.000000e+00 : f32
    %68 = arith.mulf %cst_26, %16 : f32
    %cst_27 = arith.constant 1.990000e+02 : f32
    %69 = arith.minimumf %68, %cst_27 : f32
    %c-1_i32 = arith.constant -1 : i32
    %c2139095040_i32 = arith.constant 2139095040 : i32
    %c0_i32 = arith.constant 0 : i32
    %c31_i32 = arith.constant 31 : i32
    %70 = arith.addi %c0_i32, %c31_i32 : i32
    %c1_i32 = arith.constant 1 : i32
    %71:2 = scf.for %arg6 = %c0_i32 to %70 step %c1_i32 iter_args(%arg7 = %c-1_i32, %arg8 = %c2139095040_i32) -> (i32, i32)  : i32 {
      %89 = arith.subi %arg8, %arg7 : i32
      %c1_i32_33 = arith.constant 1 : i32
      %90 = arith.shrsi %89, %c1_i32_33 : i32
      %91 = arith.addi %arg7, %90 : i32
      %92 = vector.broadcast %91 : i32 to vector<1x200xi32>
      %93 = arith.cmpi sgt, %67, %92 : vector<1x200xi32>
      %94 = arith.extui %93 : vector<1x200xi1> to vector<1x200xi32>
      %95 = arith.sitofp %94 : vector<1x200xi32> to vector<1x200xf32>
      %96 = vector.shape_cast %95 : vector<1x200xf32> to vector<1x1x200xf32>
      %cst_34 = arith.constant dense<0.000000e+00> : vector<1xf32>
      %97 = vector.multi_reduction <add>, %96, %cst_34 [1, 2] : vector<1x1x200xf32> to vector<1xf32>
      %98 = vector.shape_cast %97 : vector<1xf32> to vector<1x1x1xf32>
      %99 = vector.extract %98[0, 0, 0] : f32 from vector<1x1x1xf32>
      %100 = arith.cmpf oge, %99, %69 : f32
      %101 = arith.select %100, %91, %arg7 : i32
      %102 = arith.select %100, %arg8, %91 : i32
      scf.yield %101, %102 : i32, i32
    }
    %72 = vector.broadcast %71#1 : i32 to vector<1x200xi32>
    %73 = arith.cmpi sge, %67, %72 : vector<1x200xi32>
    %74 = arith.extui %73 : vector<1x200xi1> to vector<1x200xi32>
    %75 = arith.sitofp %74 : vector<1x200xi32> to vector<1x200xf32>
    %76 = vector.extract_strided_slice %4 {offsets = [0, 0], sizes = [1, 200], strides = [1, 1]} : vector<8x200xf32> to vector<1x200xf32>
    %77 = arith.subf %47, %76 : vector<1x200xf32>
    %78 = arith.mulf %77, %75 : vector<1x200xf32>
    %79 = vector.shape_cast %78 : vector<1x200xf32> to vector<1x1x200xf32>
    %cst_28 = arith.constant dense<0.000000e+00> : vector<1xf32>
    %80 = vector.multi_reduction <add>, %79, %cst_28 [1, 2] : vector<1x1x200xf32> to vector<1xf32>
    %81 = vector.shape_cast %80 : vector<1xf32> to vector<1x1x1xf32>
    %82 = vector.extract %81[0, 0, 0] : f32 from vector<1x1x1xf32>
    %83 = arith.mulf %82, %20 : f32
    %cst_29 = arith.constant 1.000000e+00 : f32
    %84 = arith.mulf %cst_29, %38 : f32
    %85 = arith.addf %84, %63 : f32
    %86 = arith.addf %85, %83 : f32
    %87 = vector.broadcast %86 : f32 to vector<1x1x1xf32>
    %c0_30 = arith.constant 0 : index
    %c0_31 = arith.constant 0 : index
    %c0_32 = arith.constant 0 : index
    %88 = vector.load %arg5[%c0_30, %c0_31, %c0_32] : memref<1x1x1xf32, #tpu.memory_space<vmem>>, vector<1x1x1xf32>
    tpu.vector_store %arg5[%c0_30, %c0_31, %c0_32], %87 {strides = array<i32>} : memref<1x1x1xf32, #tpu.memory_space<vmem>>, vector<1x1x1xf32>,
    return
  }
  func.func @transform_0(%arg0: i32) -> (i32, i32, i32) {
    %c0_i32 = arith.constant 0 : i32
    %c0_i32_0 = arith.constant 0 : i32
    %c0_i32_1 = arith.constant 0 : i32
    return %arg0, %c0_i32, %c0_i32_0 : i32, i32, i32
  }
  func.func @transform_1(%arg0: i32) -> (i32, i32, i32) {
    %c0_i32 = arith.constant 0 : i32
    %c0_i32_0 = arith.constant 0 : i32
    %c0_i32_1 = arith.constant 0 : i32
    return %arg0, %c0_i32, %c0_i32_0 : i32, i32, i32
  }
  func.func @transform_2(%arg0: i32) -> (i32, i32, i32) {
    %c0_i32 = arith.constant 0 : i32
    %c0_i32_0 = arith.constant 0 : i32
    %c0_i32_1 = arith.constant 0 : i32
    return %arg0, %c0_i32, %c0_i32_0 : i32, i32, i32
  }
  func.func @transform_3(%arg0: i32) -> (i32, i32, i32) {
    %c0_i32 = arith.constant 0 : i32
    %c0_i32_0 = arith.constant 0 : i32
    %c0_i32_1 = arith.constant 0 : i32
    return %arg0, %c0_i32, %c0_i32_0 : i32, i32, i32
  }
  func.func @transform_4(%arg0: i32) -> (i32, i32, i32) {
    %c0_i32 = arith.constant 0 : i32
    %c0_i32_0 = arith.constant 0 : i32
    %c0_i32_1 = arith.constant 0 : i32
    return %arg0, %c0_i32, %c0_i32_0 : i32, i32, i32
  }
}

</mosaic_0001>

<llo_original>
// kernel: tpu_custom_call.1
$region0: #{tpu_custom_call.1}
  #allocation0 [shape = 'u32[]', space=smem, size = 0x4, offset = 0x4, fixed_abs, tag = 'smem constant byte address 0x4 - core index']
  #allocation1 [shape = 'u32[144,128]{1,0:T(1,128)}', space=vmem, size = 0x12000, scoped, tag = 'internal scratch']
  %s0 = inlined_call_operand.hbm [shape: f32[2,4,200], index: 0, kind: input, shape index: {}]
  %s1 = inlined_call_operand.hbm [shape: bf16[2,8,200], index: 1, kind: input, shape index: {}]
  %s2 = inlined_call_operand.hbm [shape: f32[2,4,200], index: 2, kind: input, shape index: {}]
  %s3 = inlined_call_operand.vmem [shape: f32[2,1,200], index: 3, kind: input, shape index: {}]
  %s4 = inlined_call_operand.vmem [shape: f32[2,1,1], index: 4, kind: output, shape index: {}]
  %s5 = sld [smem:[#allocation0]]
  $region68: #{tpu_custom_call.1} parent=0
    _
  %s7 = ssub.s32 1, %s5
  %s8 = scalar_select 0, %s7, %s5
  $region1: #{tpu_custom_call.1} parent=0
    #allocation2 [shape = 'u8[8192]{0}', space=vmem, size = 0x2000, scoped, tag = 'input window, operand 0']
    #allocation3 [shape = 's32[2]{0}', space=sflag, size = 0x8, scoped, tag = 'scoped memory for tpu_custom_call.1']
    #allocation4 [shape = 'u8[8192]{0}', space=vmem, size = 0x2000, scoped, tag = 'input window, operand 1']
    #allocation5 [shape = 's32[2]{0}', space=sflag, size = 0x8, scoped, tag = 'scoped memory for tpu_custom_call.1']
    #allocation6 [shape = 'u8[8192]{0}', space=vmem, size = 0x2000, scoped, tag = 'input window, operand 2']
    %9 = vsyncpa [#allocation3], 0
    %s10 = scalar_lea.sflag [#allocation3], 1
    %11 = vsyncpa %s10, 0
    %12 = vsyncpa [#allocation5], 0
    %s13 = scalar_lea.sflag [#allocation5], 1
    %14 = vsyncpa %s13, 0
    loop: start=0, step=1, limit=4
    $region2: #{tpu_custom_call.1} parent=1 // loop_pre_header
      _
    $region3: #{tpu_custom_call.1} parent=1 // loop_header
      %s16 = sphi 0, %s20
      %p17 = scmp.ge.s32.totalorder %s16, 4
      %s26 = sphi 0, %s28
      %s29 = sphi 0, %s26
      %s30 = sphi 0, %s29
      %s46 = sphi 0, %s30
      %s52 = sphi 0, %s54
      %s55 = sphi 0, %s52
      %s56 = sphi 0, %s55
      %s72 = sphi 0, %s56
      %s78 = sphi 0, %s80
      %s81 = sphi 0, %s78
      %s82 = sphi 0, %s81
      %s98 = sphi 0, %s82
      %s104 = sphi 0, %s106
      %s107 = sphi 0, %s104
      %s108 = sphi 0, %s107
      %s124 = sphi 0, %s108
      %s130 = sphi 0, %s132
      %s133 = sphi 0, %s130
      %s134 = sphi 0, %s133
      %s150 = sphi 0, %s134
    $region4: #{tpu_custom_call.1} parent=1 // loop_header_branch
      %19 = sbr.rel (%p17) target = $region8
    $region5: #{tpu_custom_call.1} parent=1 // loop_body
      %s21 = ssub.s32 %s16, 1
      %s22 = ssub.s32 %s16, 2
      %s23 = sadd.s32 %s16, 1
      %s24 = ssub.s32 %s16, %s23
      %p25 = scmp.eq.s32.totalorder %s24, 0
      %s27 = sadd.s32 %s26, 1
      %s28 = scalar_select %p25, %s26, %s27
      %p31 = pneg %p25
      %p32 = scmp.eq.s32.totalorder %s16, 1
      %p33 = por %p31, %p32
      %p34 = scmp.ne.s32.totalorder %s26, %s29
      %p35 = scmp.eq.s32.totalorder %s16, 0
      %p36 = por %p34, %p35
      %p37 = scmp.ne.s32.totalorder %s26, %s29
      %p38 = scmp.eq.s32.totalorder %s21, 1
      %p39 = por %p37, %p38
      %p40 = scmp.ne.s32.totalorder %s29, %s30
      %p41 = scmp.eq.s32.totalorder %s21, 0
      %p42 = por %p40, %p41
      %p43 = scmp.ne.s32.totalorder %s29, %s30
      %p44 = scmp.eq.s32.totalorder %s22, 1
      %p45 = por %p43, %p44
      %p47 = scmp.ne.s32.totalorder %s30, %s46
      %p48 = scmp.eq.s32.totalorder %s22, 0
      %p49 = por %p47, %p48
      %s50 = ssub.s32 %s16, %s23
      %p51 = scmp.eq.s32.totalorder %s50, 0
      %s53 = sadd.s32 %s52, 1
      %s54 = scalar_select %p51, %s52, %s53
      %p57 = pneg %p51
      %p58 = scmp.eq.s32.totalorder %s16, 1
      %p59 = por %p57, %p58
      %p60 = scmp.ne.s32.totalorder %s52, %s55
      %p61 = scmp.eq.s32.totalorder %s16, 0
      %p62 = por %p60, %p61
      %p63 = scmp.ne.s32.totalorder %s52, %s55
      %p64 = scmp.eq.s32.totalorder %s21, 1
      %p65 = por %p63, %p64
      %p66 = scmp.ne.s32.totalorder %s55, %s56
      %p67 = scmp.eq.s32.totalorder %s21, 0
      %p68 = por %p66, %p67
      %p69 = scmp.ne.s32.totalorder %s55, %s56
      %p70 = scmp.eq.s32.totalorder %s22, 1
      %p71 = por %p69, %p70
      %p73 = scmp.ne.s32.totalorder %s56, %s72
      %p74 = scmp.eq.s32.totalorder %s22, 0
      %p75 = por %p73, %p74
      %s76 = ssub.s32 %s16, %s23
      %p77 = scmp.eq.s32.totalorder %s76, 0
      %s79 = sadd.s32 %s78, 1
      %s80 = scalar_select %p77, %s78, %s79
      %p83 = pneg %p77
      %p84 = scmp.eq.s32.totalorder %s16, 1
      %p85 = por %p83, %p84
      %p86 = scmp.ne.s32.totalorder %s78, %s81
      %p87 = scmp.eq.s32.totalorder %s16, 0
      %p88 = por %p86, %p87
      %p89 = scmp.ne.s32.totalorder %s78, %s81
      %p90 = scmp.eq.s32.totalorder %s21, 1
      %p91 = por %p89, %p90
      %p92 = scmp.ne.s32.totalorder %s81, %s82
      %p93 = scmp.eq.s32.totalorder %s21, 0
      %p94 = por %p92, %p93
      %p95 = scmp.ne.s32.totalorder %s81, %s82
      %p96 = scmp.eq.s32.totalorder %s22, 1
      %p97 = por %p95, %p96
      %p99 = scmp.ne.s32.totalorder %s82, %s98
      %p100 = scmp.eq.s32.totalorder %s22, 0
      %p101 = por %p99, %p100
      %s102 = ssub.s32 %s16, %s23
      %p103 = scmp.eq.s32.totalorder %s102, 0
      %s105 = sadd.s32 %s104, 1
      %s106 = scalar_select %p103, %s104, %s105
      %p109 = pneg %p103
      %p110 = scmp.eq.s32.totalorder %s16, 1
      %p111 = por %p109, %p110
      %p112 = scmp.ne.s32.totalorder %s104, %s107
      %p113 = scmp.eq.s32.totalorder %s16, 0
      %p114 = por %p112, %p113
      %p115 = scmp.ne.s32.totalorder %s104, %s107
      %p116 = scmp.eq.s32.totalorder %s21, 1
      %p117 = por %p115, %p116
      %p118 = scmp.ne.s32.totalorder %s107, %s108
      %p119 = scmp.eq.s32.totalorder %s21, 0
      %p120 = por %p118, %p119
      %p121 = scmp.ne.s32.totalorder %s107, %s108
      %p122 = scmp.eq.s32.totalorder %s22, 1
      %p123 = por %p121, %p122
      %p125 = scmp.ne.s32.totalorder %s108, %s124
      %p126 = scmp.eq.s32.totalorder %s22, 0
      %p127 = por %p125, %p126
      %s128 = ssub.s32 %s16, %s23
      %p129 = scmp.eq.s32.totalorder %s128, 0
      %s131 = sadd.s32 %s130, 1
      %s132 = scalar_select %p129, %s130, %s131
      %p135 = pneg %p129
      %p136 = scmp.eq.s32.totalorder %s16, 1
      %p137 = por %p135, %p136
      %p138 = scmp.ne.s32.totalorder %s130, %s133
      %p139 = scmp.eq.s32.totalorder %s16, 0
      %p140 = por %p138, %p139
      %p141 = scmp.ne.s32.totalorder %s130, %s133
      %p142 = scmp.eq.s32.totalorder %s21, 1
      %p143 = por %p141, %p142
      %p144 = scmp.ne.s32.totalorder %s133, %s134
      %p145 = scmp.eq.s32.totalorder %s21, 0
      %p146 = por %p144, %p145
      %p147 = scmp.ne.s32.totalorder %s133, %s134
      %p148 = scmp.eq.s32.totalorder %s22, 1
      %p149 = por %p147, %p148
      %p151 = scmp.ne.s32.totalorder %s134, %s150
      %p152 = scmp.eq.s32.totalorder %s22, 0
      %p153 = por %p151, %p152
      %p154 = scmp.le.s32.totalorder 1, %s16
      %p155 = scmp.lt.s32.totalorder %s16, 3
      %p156 = pnand %p154, %p155
      %p157 = pneg %p156
      // Predicated region
      $region9: #{tpu_custom_call.1} parent=5 // pred_check
        _
      $region10: #{tpu_custom_call.1} parent=5 // pred_check_branch
        %159 = sbr.rel (%p156) target = $region12
      $region11: #{tpu_custom_call.1} parent=5 // pred_region
        %s160 = ssub.s32 %s16, 1
      $region12: #{tpu_custom_call.1} parent=5 // pred_fallthru
        _
      %p161 = scmp.lt.s32.totalorder %s16, 2
      // Predicated region
      $region13: #{tpu_custom_call.1} parent=5 // pred_check
        %p162 = pneg %p161
      $region14: #{tpu_custom_call.1} parent=5 // pred_check_branch
        %164 = sbr.rel (%p162) target = $region16
      $region15: #{tpu_custom_call.1} parent=5 // pred_region
        // Predicated region
        $region17: #{tpu_custom_call.1} parent=15 // pred_check
          %p165 = pneg %p36
        $region18: #{tpu_custom_call.1} parent=15 // pred_check_branch
          %167 = sbr.rel (%p165) target = $region20
        $region19: #{tpu_custom_call.1} parent=15 // pred_region
          %s168 = sand.u32 %s26, 1
          %s169 = scalar_lea.sflag [#allocation3], %s168
          %s170 = sand.u32 %s26, 1
          %s171 = smul.addr %s170, 8
          %s172 = scalar_lea.vmem [#allocation2], %s171
          %s174 = ssub.s32 128, 128
          %175 = vsyncadd %s169, %s174
          %s176 = smul.addr %s16, 2
          %s177 = smul.addr %s176, 64
          %s178 = scalar_lea.hbm %s0, %s177
          %s180 = sshll.u32 %s172, 4
          %s181 = int_to_ptr.vmem [resolvable:$true] %s180
          %183 = dma.hbm_to_vmem [thread:$0]  %s178, 128, %s181, %s169
        $region20: #{tpu_custom_call.1} parent=15 // pred_fallthru
          _
        // Predicated region
        $region21: #{tpu_custom_call.1} parent=15 // pred_check
          %p184 = pneg %p62
        $region22: #{tpu_custom_call.1} parent=15 // pred_check_branch
          %186 = sbr.rel (%p184) target = $region24
        $region23: #{tpu_custom_call.1} parent=15 // pred_region
          %s187 = sand.u32 %s16, 1
          %s188 = scalar_lea.sflag [#allocation5], %s187
          %s189 = sand.u32 %s52, 1
          %s190 = smul.addr %s189, 8
          %s191 = scalar_lea.vmem [#allocation4], %s190
          %s193 = ssub.s32 128, 128
          %194 = vsyncadd %s188, %s193
          %s195 = smul.addr %s16, 2
          %s196 = smul.addr %s195, 64
          %s197 = scalar_lea.hbm %s1, %s196
          %s199 = sshll.u32 %s191, 4
          %s200 = int_to_ptr.vmem [resolvable:$true] %s199
          %202 = dma.hbm_to_vmem [thread:$0]  %s197, 128, %s200, %s188
        $region24: #{tpu_custom_call.1} parent=15 // pred_fallthru
          _
        // Predicated region
        $region25: #{tpu_custom_call.1} parent=15 // pred_check
          %p203 = pneg %p88
        $region26: #{tpu_custom_call.1} parent=15 // pred_check_branch
          %205 = sbr.rel (%p203) target = $region28
        $region27: #{tpu_custom_call.1} parent=15 // pred_region
          %s206 = sand.u32 %s16, 1
          %s207 = scalar_lea.sflag [#allocation5], %s206
          %s208 = sand.u32 %s78, 1
          %s209 = smul.addr %s208, 8
          %s210 = scalar_lea.vmem [#allocation6], %s209
          %s212 = ssub.s32 128, 128
          %213 = vsyncadd %s207, %s212
          %s214 = smul.addr %s16, 2
          %s215 = smul.addr %s214, 64
          %s216 = scalar_lea.hbm %s2, %s215
          %s218 = sshll.u32 %s210, 4
          %s219 = int_to_ptr.vmem [resolvable:$true] %s218
          %221 = dma.hbm_to_vmem [thread:$0]  %s216, 128, %s219, %s207
        $region28: #{tpu_custom_call.1} parent=15 // pred_fallthru
          _
        // Predicated region
        $region29: #{tpu_custom_call.1} parent=15 // pred_check
          %p222 = pneg %p114
        $region30: #{tpu_custom_call.1} parent=15 // pred_check_branch
          %224 = sbr.rel (%p222) target = $region32
        $region31: #{tpu_custom_call.1} parent=15 // pred_region
          %p225 = scmp.lt.s32.totalorder %s16, 1
          %s226 = scalar_select %p225, %s16, 1
          %s227 = smul.addr %s226, 2
          %s228 = scalar_lea.vmem %s3, %s227
        $region32: #{tpu_custom_call.1} parent=15 // pred_fallthru
          _
      $region16: #{tpu_custom_call.1} parent=5 // pred_fallthru
        _
      %p229 = scmp.le.s32.totalorder 1, %s16
      %p230 = scmp.lt.s32.totalorder %s16, 3
      %p231 = pnand %p229, %p230
      %p232 = pneg %p231
      // Predicated region
      $region33: #{tpu_custom_call.1} parent=5 // pred_check
        _
      $region34: #{tpu_custom_call.1} parent=5 // pred_check_branch
        %234 = sbr.rel (%p231) target = $region36
      $region35: #{tpu_custom_call.1} parent=5 // pred_region
        %s235 = ssub.s32 %s16, 1
        %s236 = sand.u32 %s29, 1
        %s237 = scalar_lea.sflag [#allocation3], %s236
        %s238 = sand.u32 %s29, 1
        %s239 = smul.addr %s238, 8
        %s240 = scalar_lea.vmem [#allocation2], %s239
        // Predicated region
        $region37: #{tpu_custom_call.1} parent=35 // pred_check
          %p241 = pneg %p42
        $region38: #{tpu_custom_call.1} parent=35 // pred_check_branch
          %243 = sbr.rel (%p241) target = $region40
        $region39: #{tpu_custom_call.1} parent=35 // pred_region
          %244 = dma.done %s237, 128
        $region40: #{tpu_custom_call.1} parent=35 // pred_fallthru
          _
        %s245 = sand.u32 %s21, 1
        %s246 = scalar_lea.sflag [#allocation5], %s245
        %s247 = sand.u32 %s55, 1
        %s248 = smul.addr %s247, 8
        %s249 = scalar_lea.vmem [#allocation4], %s248
        // Predicated region
        $region41: #{tpu_custom_call.1} parent=35 // pred_check
          %p250 = pneg %p68
        $region42: #{tpu_custom_call.1} parent=35 // pred_check_branch
          %252 = sbr.rel (%p250) target = $region44
        $region43: #{tpu_custom_call.1} parent=35 // pred_region
          %253 = dma.done %s246, 128
        $region44: #{tpu_custom_call.1} parent=35 // pred_fallthru
          _
        %s254 = sand.u32 %s21, 1
        %s255 = scalar_lea.sflag [#allocation5], %s254
        %s256 = sand.u32 %s81, 1
        %s257 = smul.addr %s256, 8
        %s258 = scalar_lea.vmem [#allocation6], %s257
        // Predicated region
        $region45: #{tpu_custom_call.1} parent=35 // pred_check
          %p259 = pneg %p94
        $region46: #{tpu_custom_call.1} parent=35 // pred_check_branch
          %261 = sbr.rel (%p259) target = $region48
        $region47: #{tpu_custom_call.1} parent=35 // pred_region
          %262 = dma.done %s255, 128
        $region48: #{tpu_custom_call.1} parent=35 // pred_fallthru
          _
        %s263 = sand.u32 %s29, 1
        %s264 = scalar_lea.sflag [#allocation3], %s263
        %s265 = sand.u32 %s29, 1
        %s266 = smul.addr %s265, 8
        %s267 = scalar_lea.vmem [#allocation2], %s266
        %p268 = pneg %p42
        %p269 = pneg %p39
        %s270 = sand.u32 %s21, 1
        %s271 = scalar_lea.sflag [#allocation5], %s270
        %s272 = sand.u32 %s55, 1
        %s273 = smul.addr %s272, 8
        %s274 = scalar_lea.vmem [#allocation4], %s273
        %p275 = pneg %p68
        %p276 = pneg %p65
        %s277 = sand.u32 %s21, 1
        %s278 = scalar_lea.sflag [#allocation5], %s277
        %s279 = sand.u32 %s81, 1
        %s280 = smul.addr %s279, 8
        %s281 = scalar_lea.vmem [#allocation6], %s280
        %p282 = pneg %p94
        %p283 = pneg %p91
        %p284 = scmp.lt.s32.totalorder %s21, 1
        %s285 = scalar_select %p284, %s21, 1
        %s286 = smul.addr %s285, 2
        %s287 = scalar_lea.vmem %s3, %s286
        %p288 = pneg %p120
        %p289 = pneg %p117
        %p290 = pneg %p146
        %p291 = pneg %p143
        %p292 = scmp.lt.s32.totalorder %s21, 1
        %s293 = scalar_select %p292, %s21, 1
        %s294 = scalar_lea.vmem %s4, %s293
        %p295 = scmp.lt.s32.totalorder %s21, 1
        %s296 = scalar_select %p295, %s21, 1
        %s297 = smul.addr %s296, 2
        %s298 = scalar_lea.vmem %s3, %s297
        %p299 = scmp.lt.s32.totalorder %s21, 1
        %s300 = scalar_select %p299, %s21, 1
        %s301 = scalar_lea.vmem %s4, %s300
        %v302 = vld [vmem:[%s240] sm:$0xff]
        %v303 = vld [vmem:[%s249] sm:$0xff]
        %v304 = vunpack.c.l.bf16 %v303
        %v305 = vunpack.c.h.bf16 %v303
        %v306 = vld [vmem:[%s258] sm:$0xff]
        %v307 = vld [vmem:[%s298] sm:$0x3]
        %vm308 = vcmp.gt.f32.partialorder %v307, 0.0
        %v309 = vsel %vm308, 1, 0
        %v310 = vcvt.s32.f32 %v309
        %v312 = vlaneseq
        %v313 = vshrl.u32 %v312, 7
        %v314 = vsub.s32 0, %v313
        %v315 = vrot.slane %v310, %v314
        %v316 = vlaneseq
        %v317 = vshrl.u32 %v316, 7
        %v318 = vsub.s32 1, %v317
        %v319 = vrot.slane %v310, %v318
        %vm322 = vcmask 1040384
        %v323 = vsel %vm322, %v315, 0.0
        %vm324 = vcmask 581632
        %v325 = vsel %vm324, %v319, 0.0
        %v326 = vadd.f32 %v323, %v325
        %327 = vadd.xlane.f32.xlu0 %v326
        %v328 = vpop.xlane.xlu0 %327
        %v329 = vrot.slane %v328, 4
        %v330 = vadd.f32 %v328, %v329
        %v331 = vrot.slane %v330, 2
        %v332 = vadd.f32 %v330, %v331
        %v333 = vrot.slane %v332, 1
        %v334 = vadd.f32 %v332, %v333
        %s335 = vtos %v334
        %p336 = scmp.gt.f32.partialorder %s335, 0.0
        %s337 = smax.f32 %s335, 1.0
        %v338 = vstv %s337
        %v339 = vrcp.pop %v338
        %s340 = vtos %v339
        %s341 = scalar_select %p336, %s340, 0.0
        %v342 = vsub.f32 %v302, %v306
        %v343 = vand.u32 2147483647, %v342
        %vm344 = vcmp.lt.f32.partialorder %v343, 1.0
        %v345 = vmul.f32 %v342, 0.5
        %v346 = vmul.f32 %v345, %v342
        %v347 = vsub.f32 %v343, 0.5
        %v348 = vsel %vm344, %v346, %v347
        %v350 = vcombine.high %v348, %v348
        %vm352 = vcmask 1043456
        %v353 = vsel %vm352, %v348, 0.0
        %v354 = vrot.slane %v353, 4
        %v355 = vadd.f32 %v353, %v354
        %v356 = vrot.slane %v355, 2
        %v357 = vadd.f32 %v355, %v356
        %v358 = vrot.slane %v357, 1
        %v359 = vadd.f32 %v357, %v358
        %vm360 = vcmask 584704
        %v361 = vsel %vm360, %v350, 0.0
        %v362 = vrot.slane %v361, 4
        %v363 = vadd.f32 %v361, %v362
        %v364 = vrot.slane %v363, 2
        %v365 = vadd.f32 %v363, %v364
        %v366 = vrot.slane %v365, 1
        %v367 = vadd.f32 %v365, %v366
        %v368 = vmul.f32 %v359, %v315
        %v369 = vmul.f32 %v367, %v319
        %v370 = vsel %vm322, %v368, 0.0
        %v371 = vsel %vm324, %v369, 0.0
        %v372 = vadd.f32 %v370, %v371
        %373 = vadd.xlane.f32.xlu0 %v372
        %v374 = vpop.xlane.xlu0 %373
        %v375 = vrot.slane %v374, 4
        %v376 = vadd.f32 %v374, %v375
        %v377 = vrot.slane %v376, 2
        %v378 = vadd.f32 %v376, %v377
        %v379 = vrot.slane %v378, 1
        %v380 = vadd.f32 %v378, %v379
        %s381 = vtos %v380
        %s382 = smul.f32 %s381, %s341
        %v383 = vrot.slane %v304, 4
        %v384 = vmax.f32 %v304, %v383
        %v385 = vrot.slane %v384, 2
        %v386 = vmax.f32 %v384, %v385
        %v387 = vrot.slane %v386, 1
        %v388 = vmax.f32 %v386, %v387
        %vm389 = vcmask 588800
        %v390 = vsel %vm389, %v305, -inf
        %v391 = vrot.slane %v390, 4
        %v392 = vmax.f32 %v390, %v391
        %v393 = vrot.slane %v392, 2
        %v394 = vmax.f32 %v392, %v393
        %v395 = vrot.slane %v394, 1
        %v396 = vmax.f32 %v394, %v395
        %v397 = vsub.f32 %v304, %v388
        %v398 = vsub.f32 %v305, %v396
        %v399 = vmul.f32 %v397, 1.442695
        %v400 = vpow.pop %v399
        %v401 = vmul.f32 %v398, 1.442695
        %v402 = vpow.pop %v401
        %v403 = vrot.slane %v400, 4
        %v404 = vadd.f32 %v400, %v403
        %v405 = vrot.slane %v404, 2
        %v406 = vadd.f32 %v404, %v405
        %v407 = vrot.slane %v406, 1
        %v408 = vadd.f32 %v406, %v407
        %v409 = vsel %vm389, %v402, 0.0
        %v410 = vrot.slane %v409, 4
        %v411 = vadd.f32 %v409, %v410
        %v412 = vrot.slane %v411, 2
        %v413 = vadd.f32 %v411, %v412
        %v414 = vrot.slane %v413, 1
        %v415 = vadd.f32 %v413, %v414
        %v416 = vlog2.pop %v408
        %v417 = vmul.f32 %v416, 0.6931472
        %v418 = vlog2.pop %v415
        %v419 = vmul.f32 %v418, 0.6931472
        %v420 = vadd.f32 %v417, %v388
        %v421 = vadd.f32 %v419, %v396
        %v422 = vlaneseq
        %v423 = vshrl.u32 %v422, 7
        %v424 = vcvt.f32.s32.to.zero.pseudo %v307
        %v425 = vlaneseq
        %v426 = vshrl.u32 %v425, 7
        %v427 = vsub.s32 0, %v426
        %v428 = vrot.slane %v424, %v427
        %v429 = vlaneseq
        %v430 = vshrl.u32 %v429, 7
        %v431 = vsub.s32 1, %v430
        %v432 = vrot.slane %v424, %v431
        %vm433 = vcmp.eq.s32.totalorder %v423, %v428
        %vm434 = vcmp.eq.s32.totalorder %v423, %v432
        %v435 = vsel %vm433, 1, 0
        %v436 = vsel %vm434, 1, 0
        %v437 = vcvt.s32.f32 %v435
        %v438 = vcvt.s32.f32 %v436
        %v439 = vmul.f32 %v304, %v437
        %v440 = vmul.f32 %v305, %v438
        %v441 = vrot.slane %v439, 4
        %v442 = vadd.f32 %v439, %v441
        %v443 = vrot.slane %v442, 2
        %v444 = vadd.f32 %v442, %v443
        %v445 = vrot.slane %v444, 1
        %v446 = vadd.f32 %v444, %v445
        %v447 = vsel %vm389, %v440, 0.0
        %v448 = vrot.slane %v447, 4
        %v449 = vadd.f32 %v447, %v448
        %v450 = vrot.slane %v449, 2
        %v451 = vadd.f32 %v449, %v450
        %v452 = vrot.slane %v451, 1
        %v453 = vadd.f32 %v451, %v452
        %v454 = vsub.f32 %v420, %v446
        %v455 = vsub.f32 %v421, %v453
        %v456 = vmul.f32 %v454, %v315
        %v457 = vmul.f32 %v455, %v319
        %v458 = vsel %vm322, %v456, 0.0
        %v459 = vsel %vm324, %v457, 0.0
        %v460 = vadd.f32 %v458, %v459
        %461 = vadd.xlane.f32.xlu0 %v460
        %v462 = vpop.xlane.xlu0 %461
        %v463 = vrot.slane %v462, 4
        %v464 = vadd.f32 %v462, %v463
        %v465 = vrot.slane %v464, 2
        %v466 = vadd.f32 %v464, %v465
        %v467 = vrot.slane %v466, 1
        %v468 = vadd.f32 %v466, %v467
        %s469 = vtos %v468
        %s470 = smul.f32 %s469, %s341
        %v471 = vsub.f32 1.0, %v310
        %v473 = vlaneseq
        %v474 = vshrl.u32 %v473, 7
        %v475 = vsub.s32 0, %v474
        %v476 = vrot.slane %v471, %v475
        %v477 = vlaneseq
        %v478 = vshrl.u32 %v477, 7
        %v479 = vsub.s32 1, %v478
        %v480 = vrot.slane %v471, %v479
        %v483 = vmul.f32 %v454, %v476
        %v484 = vmul.f32 %v455, %v480
        %s487 = smul.f32 %s335, 3.0
        %s488 = smin.f32 %s487, 199.0
        loop: start=0, step=1, limit=31
        $region49: #{tpu_custom_call.1} parent=35 // loop_pre_header
          _
        $region50: #{tpu_custom_call.1} parent=35 // loop_header
          %s490 = sphi 0, %s494
          %p491 = scmp.ge.s32.totalorder %s490, 31
          %s495 = sphi 4294967295, %s520
          %s496 = sphi 2139095040, %s521
        $region51: #{tpu_custom_call.1} parent=35 // loop_header_branch
          %493 = sbr.rel (%p491) target = $region55
        $region52: #{tpu_custom_call.1} parent=35 // loop_body
          %s497 = ssub.s32 %s496, %s495
          %s498 = sshra.s32 %s497, 1
          %s499 = sadd.s32 %s495, %s498
          %v500 = vstv %s499
          %vm501 = vcmp.gt.s32.totalorder %v483, %v500
          %vm502 = vcmp.gt.s32.totalorder %v484, %v500
          %v503 = vsel %vm501, 1, 0
          %v504 = vsel %vm502, 1, 0
          %v505 = vcvt.s32.f32 %v503
          %v506 = vcvt.s32.f32 %v504
          %v507 = vsel %vm322, %v505, 0.0
          %v508 = vsel %vm324, %v506, 0.0
          %v509 = vadd.f32 %v507, %v508
          %510 = vadd.xlane.f32.xlu0 %v509
          %v511 = vpop.xlane.xlu0 %510
          %v512 = vrot.slane %v511, 4
          %v513 = vadd.f32 %v511, %v512
          %v514 = vrot.slane %v513, 2
          %v515 = vadd.f32 %v513, %v514
          %v516 = vrot.slane %v515, 1
          %v517 = vadd.f32 %v515, %v516
          %s518 = vtos %v517
          %p519 = scmp.ge.f32.partialorder %s518, %s488
          %s520 = scalar_select %p519, %s499, %s495
          %s521 = scalar_select %p519, %s496, %s499
        $region53: #{tpu_custom_call.1} parent=35 // loop_footer
          %s494 = sadd.s32 1, %s490
        $region54: #{tpu_custom_call.1} parent=35 // loop_footer_branch
          %489 = sbr.rel target = $region50
        $region55: #{tpu_custom_call.1} parent=35 // loop_exit
          _
        %v522 = vstv %s496
        %vm523 = vcmp.ge.s32.totalorder %v483, %v522
        %vm524 = vcmp.ge.s32.totalorder %v484, %v522
        %v525 = vsel %vm523, 1, 0
        %v526 = vsel %vm524, 1, 0
        %v527 = vcvt.s32.f32 %v525
        %v528 = vcvt.s32.f32 %v526
        %v529 = vsub.f32 %v420, %v304
        %v530 = vsub.f32 %v421, %v305
        %v531 = vmul.f32 %v529, %v527
        %v532 = vmul.f32 %v530, %v528
        %v533 = vsel %vm322, %v531, 0.0
        %v534 = vsel %vm324, %v532, 0.0
        %v535 = vadd.f32 %v533, %v534
        %536 = vadd.xlane.f32.xlu0 %v535
        %v537 = vpop.xlane.xlu0 %536
        %v538 = vrot.slane %v537, 4
        %v539 = vadd.f32 %v537, %v538
        %v540 = vrot.slane %v539, 2
        %v541 = vadd.f32 %v539, %v540
        %v542 = vrot.slane %v541, 1
        %v543 = vadd.f32 %v541, %v542
        %s544 = vtos %v543
        %s545 = smul.f32 %s544, %s341
        %s546 = sadd.f32 %s382, %s470
        %s547 = sadd.f32 %s546, %s545
        %v548 = vstv %s547
        %vm549 = vcmask 0
        %550 = vst.msk [vmem:[%s301] sm:$0x1] %vm549, %v548
        %p551 = scmp.lt.s32.totalorder %s21, 1
        %s552 = scalar_select %p551, %s21, 1
        %s553 = scalar_lea.vmem %s4, %s552
        // Predicated region
        $region56: #{tpu_custom_call.1} parent=35 // pred_check
          %p554 = pneg %p143
        $region57: #{tpu_custom_call.1} parent=35 // pred_check_branch
          %556 = sbr.rel (%p554) target = $region59
        $region58: #{tpu_custom_call.1} parent=35 // pred_region
          _
        $region59: #{tpu_custom_call.1} parent=35 // pred_fallthru
          _
      $region36: #{tpu_custom_call.1} parent=5 // pred_fallthru
        _
      %p557 = scmp.le.s32.totalorder 2, %s16
      // Predicated region
      $region60: #{tpu_custom_call.1} parent=5 // pred_check
        %p558 = pneg %p557
      $region61: #{tpu_custom_call.1} parent=5 // pred_check_branch
        %560 = sbr.rel (%p558) target = $region63
      $region62: #{tpu_custom_call.1} parent=5 // pred_region
        %s561 = ssub.s32 %s16, 2
        // Predicated region
        $region64: #{tpu_custom_call.1} parent=62 // pred_check
          %p562 = pneg %p149
        $region65: #{tpu_custom_call.1} parent=62 // pred_check_branch
          %564 = sbr.rel (%p562) target = $region67
        $region66: #{tpu_custom_call.1} parent=62 // pred_region
          %p565 = scmp.lt.s32.totalorder %s22, 1
          %s566 = scalar_select %p565, %s22, 1
          %s567 = scalar_lea.vmem %s4, %s566
        $region67: #{tpu_custom_call.1} parent=62 // pred_fallthru
          _
      $region63: #{tpu_custom_call.1} parent=5 // pred_fallthru
        _
    $region6: #{tpu_custom_call.1} parent=1 // loop_footer
      %s20 = sadd.s32 1, %s16
    $region7: #{tpu_custom_call.1} parent=1 // loop_footer_branch
      %15 = sbr.rel target = $region3
    $region8: #{tpu_custom_call.1} parent=1 // loop_exit
      _
    %568 = vsyncpa [#allocation3], 1
    %s569 = scalar_lea.sflag [#allocation3], 1
    %570 = vsyncpa %s569, 1
    %571 = vsyncpa [#allocation5], 1
    %s572 = scalar_lea.sflag [#allocation5], 1
    %573 = vsyncpa %s572, 1

</llo_original>
